<compile_context>
chip_gen: v6e
topology: v6e:2x2x1
jax: 0.10.0
libtpu: 0.0.40
codegen_flags: <defaults>
</compile_context>

<pallas_src>
import jax
import jax.numpy as jnp
from jax.experimental import pallas as pl
from jax.experimental.pallas import tpu as pltpu


def _flatten_copy_kernel(x_ref, o_ref):
    # Straight copy of the current (block_rows, lane) tile. Lane-dense output
    # block (multiple of 128 lanes) -> unmasked wide stores.
    o_ref[...] = x_ref[...]


_LANE_CANDIDATES = (2048, 1536, 1024, 512, 384, 256, 128)


def _pick_lane(total):
    """Largest lane width (multiple of 128) dividing `total`, preferring one
    that also leaves a sublane-dense (multiple-of-8) row count."""
    best = None
    for cand in _LANE_CANDIDATES:
        if total % cand == 0:
            if best is None:
                best = cand
            if (total // cand) % 8 == 0:
                return cand
    return best


def _pick_block_rows(rows, lane, itemsize, max_block_bytes=2 << 20):
    """Row-block that divides `rows`, is a multiple of 8 (or full extent),
    targeting ~2 MiB per block so the pure copy amortizes the ~0.35 us
    per-grid-step overhead while 4 x block_bytes stays far under VMEM."""
    if rows % 8 != 0:
        return rows  # full-extent block is always legal
    row_bytes = lane * itemsize
    cap = max(8, min(rows, (max_block_bytes // row_bytes) // 8 * 8))
    for r in range(cap, 7, -8):
        if rows % r == 0:
            return r
    return 8


def flatten_layer(x):
    """Pallas equivalent of FlattenLayer.forward: returns x reshaped to (N, -1)."""
    n = x.shape[0]
    flat = 1
    for d in x.shape[1:]:
        flat *= d
    total = n * flat
    itemsize = jnp.dtype(x.dtype).itemsize

    # Row-major collapse of all non-batch dims (metadata only — identical
    # semantics to torch.Tensor.view(N, -1) on a contiguous tensor).
    x2d = x.reshape(n, flat)

    lane = _pick_lane(total)
    if lane is None:
        # No lane-dense slab possible; the metadata reshape is already the
        # exact result — a copy kernel would only add HBM traffic.
        return x2d

    rows = total // lane
    block_r = _pick_block_rows(rows, lane, itemsize)

    # Safety cap (v7x: 64 MiB physical / 32 MiB scoped default): if a
    # non-8-divisible row count forced a huge full-extent block, skip the copy.
    if block_r * lane * itemsize > (8 << 20):
        return x2d

    # Re-view the flat data as a lane/sublane-dense slab (still metadata-only).
    slab = x2d.reshape(rows, lane)

    out = pl.pallas_call(
        _flatten_copy_kernel,
        out_shape=jax.ShapeDtypeStruct((rows, lane), x.dtype),
        grid_spec=pltpu.PrefetchScalarGridSpec(
            num_scalar_prefetch=0,
            grid=(rows // block_r,),
            in_specs=[pl.BlockSpec((block_r, lane), lambda i: (i, 0))],
            out_specs=pl.BlockSpec((block_r, lane), lambda i: (i, 0)),
        ),
        compiler_params=pltpu.CompilerParams(
            # Single parallel axis -> shards across v7x's 2 TensorCores.
            dimension_semantics=("parallel",),
        ),
        # NOTE: callers that no longer need `x` can pass
        # input_output_aliases={0: 0} to avoid a second N*F HBM buffer; not
        # done here because the demo re-reads x afterwards.
    )(slab)

    # Metadata-only view back to the (N, F) result.
    return out.reshape(n, flat)


if __name__ == "__main__":
    key = jax.random.PRNGKey(0)
    # Small NCHW input: batch=2, channels=4, spatial=16x16  ->  flat = 1024
    x = jax.random.normal(key, (2, 4, 16, 16), dtype=jnp.float32)

    y = flatten_layer(x)
    y = jax.block_until_ready(y)

    # Sanity check against the pure-JAX reference of torch's x.view(N, -1).
    ref = x.reshape(x.shape[0], -1)
    assert y.shape == (2, 4 * 16 * 16), y.shape
    assert y.dtype == x.dtype
    assert bool(jnp.array_equal(y, ref))

    print("KERNEL_OK")
</pallas_src>

<mosaic_0001>
module attributes {stable_mosaic.version = 11 : i64} {
  func.func @_flatten_copy_kernel(%arg0: i32, %arg1: memref<8x256xf32, #tpu.memory_space<vmem>>, %arg2: memref<8x256xf32, #tpu.memory_space<vmem>>) attributes {dimension_semantics = [#tpu.dimension_semantics<parallel>], iteration_bounds = array<i64: 1>, scalar_prefetch = 0 : i64, scratch_operands = 0 : i64, tpu.core_type = #tpu.core_type<tc>, window_params = [{transform_indices = @transform_0, window_bounds = array<i64: 8, 256>}, {transform_indices = @transform_1, window_bounds = array<i64: 8, 256>}]} {
    %c0 = arith.constant 0 : index
    %c0_0 = arith.constant 0 : index
    %0 = vector.load %arg1[%c0, %c0_0] : memref<8x256xf32, #tpu.memory_space<vmem>>, vector<8x256xf32>
    %c0_1 = arith.constant 0 : index
    %c0_2 = arith.constant 0 : index
    %1 = vector.load %arg2[%c0_1, %c0_2] : memref<8x256xf32, #tpu.memory_space<vmem>>, vector<8x256xf32>
    tpu.vector_store %arg2[%c0_1, %c0_2], %0 {strides = array<i32>} : memref<8x256xf32, #tpu.memory_space<vmem>>, vector<8x256xf32>,
    return
  }
  func.func @transform_0(%arg0: i32) -> (i32, i32) {
    %c0_i32 = arith.constant 0 : i32
    %c0_i32_0 = arith.constant 0 : i32
    return %arg0, %c0_i32 : i32, i32
  }
  func.func @transform_1(%arg0: i32) -> (i32, i32) {
    %c0_i32 = arith.constant 0 : i32
    %c0_i32_0 = arith.constant 0 : i32
    return %arg0, %c0_i32 : i32, i32
  }
}

</mosaic_0001>

<llo_original>
// kernel: tpu_custom_call.1
$region0: #{tpu_custom_call.1}
  #allocation0 [shape = 'u32[]', space=smem, size = 0x4, offset = 0x4, fixed_abs, tag = 'smem constant byte address 0x4 - core index']
  #allocation1 [shape = 'u32[144,128]{1,0:T(1,128)}', space=vmem, size = 0x12000, scoped, tag = 'internal scratch']
  %s0 = inlined_call_operand.hbm [shape: f32[8,256], index: 0, kind: input, shape index: {}]
  %s1 = inlined_call_operand.hbm [shape: f32[8,256], index: 1, kind: output, shape index: {}]
  %s2 = sld [smem:[#allocation0]]
  $region18: #{tpu_custom_call.1} parent=0
    _
  %s4 = ssub.s32 1, %s2
  %s5 = scalar_select 0, %s4, %s2
  $region1: #{tpu_custom_call.1} parent=0
    #allocation2 [shape = 'u8[8192]{0}', space=vmem, size = 0x2000, scoped, tag = 'input window, operand 0, single buffered']
    #allocation3 [shape = 's32[1]{0}', space=sflag, size = 0x4, scoped, tag = 'scoped memory for tpu_custom_call.1']
    #allocation4 [shape = 's32[1]{0}', space=sflag, size = 0x4, scoped, tag = 'scoped memory for tpu_custom_call.1']
    #allocation5 [shape = 'u8[8192]{0}', space=vmem, size = 0x2000, scoped, tag = 'output window, operand 0, single buffered']
    %6 = vsyncpa [#allocation3], 0
    %7 = vsyncpa [#allocation4], 0
    // Predicated region
    $region2: #{tpu_custom_call.1} parent=1 // pred_check
      _
    $region3: #{tpu_custom_call.1} parent=1 // pred_check_branch
      %9 = sbr.rel (0) target = $region5
    $region4: #{tpu_custom_call.1} parent=1 // pred_region
      %s11 = ssub.s32 256, 256
      %12 = vsyncadd [#allocation3], %s11
      %s14 = sshll.u32 [#allocation2], 4
      %s15 = int_to_ptr.vmem [resolvable:$true] %s14
      %17 = dma.hbm_to_vmem [thread:$0]  %s0, 256, %s15, [#allocation3]
    $region5: #{tpu_custom_call.1} parent=1 // pred_fallthru
      _
    // Predicated region
    $region6: #{tpu_custom_call.1} parent=1 // pred_check
      _
    $region7: #{tpu_custom_call.1} parent=1 // pred_check_branch
      %19 = sbr.rel (0) target = $region9
    $region8: #{tpu_custom_call.1} parent=1 // pred_region
      %20 = dma.done [#allocation3], 256
    $region9: #{tpu_custom_call.1} parent=1 // pred_fallthru
      _
    %v21 = vld [vmem:[#allocation2] sm:$0xff]
    %v22 = vld [vmem:[#allocation2 + $0x8] sm:$0xff]
    %23 = vst [vmem:[#allocation5] sm:$0xff] %v21
    %24 = vst [vmem:[#allocation5 + $0x8] sm:$0xff] %v22
    // Predicated region
    $region10: #{tpu_custom_call.1} parent=1 // pred_check
      _
    $region11: #{tpu_custom_call.1} parent=1 // pred_check_branch
      %26 = sbr.rel (0) target = $region13
    $region12: #{tpu_custom_call.1} parent=1 // pred_region
      %s28 = ssub.s32 256, 256
      %29 = vsyncadd [#allocation4], %s28
      %s31 = sshll.u32 [#allocation5], 4
      %s32 = int_to_ptr.vmem [resolvable:$true] %s31
      %34 = dma.vmem_to_hbm [thread:$0]  %s32, 256, %s1, [#allocation4]
    $region13: #{tpu_custom_call.1} parent=1 // pred_fallthru
      _
    // Predicated region
    $region14: #{tpu_custom_call.1} parent=1 // pred_check
      _
    $region15: #{tpu_custom_call.1} parent=1 // pred_check_branch
      %36 = sbr.rel (0) target = $region17
    $region16: #{tpu_custom_call.1} parent=1 // pred_region
      %37 = dma.done [#allocation4], 256
    $region17: #{tpu_custom_call.1} parent=1 // pred_fallthru
      _
    %38 = vsyncpa [#allocation3], 1
    %39 = vsyncpa [#allocation4], 1

</llo_original>
